<compile_context>
chip_gen: v7x
topology: tpu7x:2x2x1
jax: 0.10.0
libtpu: 0.0.40
codegen_flags: <defaults>
</compile_context>

<pallas_src>
import functools

import jax
import jax.numpy as jnp
from jax.experimental import pallas as pl
from jax.experimental.pallas import tpu as pltpu


def _scaler_kernel(x_ref, mean_ref, std_ref, o_ref):
  # Per-(1, tc) column stats: approximate reciprocal on the EUP (otherwise idle
  # slot) + one Newton-Raphson refinement so accuracy matches an exact divide.
  s = std_ref[...] + 1e-7
  r = pl.reciprocal(s, approx=True)
  inv = r * (2.0 - s * r)
  # Fused subtract + broadcast multiply over the (tr, tc) tile, computed in f32
  # and stored back in the caller's dtype.
  x = x_ref[...].astype(jnp.float32)
  o_ref[...] = ((x - mean_ref[...]) * inv).astype(o_ref.dtype)


def _round_up(n, m):
  return ((n + m - 1) // m) * m


@functools.partial(jax.jit, static_argnames=("block_rows", "block_cols"))
def scaler_forward(x, mean, std, *, block_rows=512, block_cols=1024):
  """ScalerModule.forward: (x - mean) / (std + 1e-7); x (N, D), mean/std (1, D)."""
  n, d = x.shape
  mean = jnp.asarray(mean, jnp.float32).reshape(1, d)
  std = jnp.asarray(std, jnp.float32).reshape(1, d)

  # Tiles must be (8, 128)-aligned OR span the full dim; they do NOT need to
  # divide the array (Pallas handles ragged edge blocks), so no padding needed.
  block_rows = max(8, _round_up(block_rows, 8))
  block_cols = max(128, _round_up(block_cols, 128))
  tr = min(_round_up(n, 8), block_rows)
  tc = d if d <= block_cols else block_cols  # full-D beats padded columns

  # Columns outer, rows inner: mean/std block index is constant over the inner
  # loop (stays resident), and row tiles give v7x megacore something to split.
  grid = (pl.cdiv(d, tc), pl.cdiv(n, tr))

  itemsize = jnp.dtype(x.dtype).itemsize
  cost = pl.CostEstimate(
      flops=2 * n * d,
      transcendentals=d,
      bytes_accessed=2 * n * d * itemsize + 2 * d * 4)

  return pl.pallas_call(
      _scaler_kernel,
      out_shape=jax.ShapeDtypeStruct((n, d), x.dtype),
      grid=grid,
      in_specs=[
          pl.BlockSpec((tr, tc), lambda j, i: (i, j)),   # x tile
          pl.BlockSpec((1, tc), lambda j, i: (0, j)),    # mean column tile
          pl.BlockSpec((1, tc), lambda j, i: (0, j)),    # std column tile
      ],
      out_specs=pl.BlockSpec((tr, tc), lambda j, i: (i, j)),
      compiler_params=pltpu.CompilerParams(
          dimension_semantics=("parallel", "parallel")),
      cost_estimate=cost,
  )(x, mean, std)


def scaler_fit(x):
  """ScalerModule.fit: column-wise mean and population std (unbiased=False)."""
  x32 = jnp.asarray(x, jnp.float32)
  mean = jnp.mean(x32, axis=0, keepdims=True)
  std = jnp.std(x32, axis=0, keepdims=True)   # ddof=0, matches unbiased=False
  return mean, std


if __name__ == "__main__":
  key = jax.random.PRNGKey(0)
  k1, k2 = jax.random.split(key)
  # (num_samples, num_extracted_features) as fed to the classifier; 163 is the
  # extracted-feature width. 200 rows / 163 cols are deliberately non-multiples
  # of the tile quanta to exercise the ragged-edge handling.
  n, d = 200, 163
  x = (jax.random.normal(k1, (n, d), dtype=jnp.float32) * 3.0
       + jax.random.normal(k2, (1, d), dtype=jnp.float32))

  mean, std = scaler_fit(x)
  ref = (x - mean) / (std + 1e-7)

  # Fast path: single grid point (whole problem resident in VMEM, one DMA
  # in / one DMA out, no per-step overhead, no padding, no slicing).
  out = jax.block_until_ready(scaler_forward(x, mean, std))
  assert out.shape == (n, d) and out.dtype == x.dtype, (out.shape, out.dtype)
  assert bool(jnp.all(jnp.isfinite(out)))
  assert bool(jnp.allclose(out, ref, atol=1e-4, rtol=1e-4)), \
      float(jnp.max(jnp.abs(out - ref)))

  # Multi-tile path: ragged edges in both grid dims (200 = 3*64 + 8,
  # 163 = 128 + 35) -> masked edge stores, still no wrapper-side pad/slice.
  out2 = jax.block_until_ready(
      scaler_forward(x, mean, std, block_rows=64, block_cols=128))
  assert bool(jnp.allclose(out2, ref, atol=1e-4, rtol=1e-4)), \
      float(jnp.max(jnp.abs(out2 - ref)))

  print("KERNEL_OK")
</pallas_src>

<mosaic_0001>
module attributes {stable_mosaic.version = 11 : i64} {
  func.func @_scaler_kernel(%arg0: i32, %arg1: i32, %arg2: memref<200x163xf32, #tpu.memory_space<vmem>>, %arg3: memref<1x163xf32, #tpu.memory_space<vmem>>, %arg4: memref<1x163xf32, #tpu.memory_space<vmem>>, %arg5: memref<200x163xf32, #tpu.memory_space<vmem>>) attributes {dimension_semantics = [#tpu.dimension_semantics<parallel>, #tpu.dimension_semantics<parallel>], iteration_bounds = array<i64: 1, 1>, scalar_prefetch = 0 : i64, scratch_operands = 0 : i64, tpu.core_type = #tpu.core_type<tc>, window_params = [{transform_indices = @transform_0, window_bounds = array<i64: 200, 163>}, {transform_indices = @transform_1, window_bounds = array<i64: 1, 163>}, {transform_indices = @transform_2, window_bounds = array<i64: 1, 163>}, {transform_indices = @transform_3, window_bounds = array<i64: 200, 163>}]} {
    %c0 = arith.constant 0 : index
    %c0_0 = arith.constant 0 : index
    %0 = vector.load %arg4[%c0, %c0_0] : memref<1x163xf32, #tpu.memory_space<vmem>>, vector<1x163xf32>
    %cst = arith.constant 1.000000e-07 : f32
    %1 = vector.broadcast %cst : f32 to vector<1x163xf32>
    %2 = arith.addf %0, %1 : vector<1x163xf32>
    %3 = tpu.reciprocal %2 {approx = true} : vector<1x163xf32> -> vector<1x163xf32>
    %4 = arith.mulf %2, %3 : vector<1x163xf32>
    %cst_1 = arith.constant 2.000000e+00 : f32
    %5 = vector.broadcast %cst_1 : f32 to vector<1x163xf32>
    %6 = arith.subf %5, %4 : vector<1x163xf32>
    %7 = arith.mulf %3, %6 : vector<1x163xf32>
    %c0_2 = arith.constant 0 : index
    %c0_3 = arith.constant 0 : index
    %8 = vector.load %arg2[%c0_2, %c0_3] : memref<200x163xf32, #tpu.memory_space<vmem>>, vector<200x163xf32>
    %c0_4 = arith.constant 0 : index
    %c0_5 = arith.constant 0 : index
    %9 = vector.load %arg3[%c0_4, %c0_5] : memref<1x163xf32, #tpu.memory_space<vmem>>, vector<1x163xf32>
    %10 = vector.broadcast %9 : vector<1x163xf32> to vector<200x163xf32>
    %11 = arith.subf %8, %10 : vector<200x163xf32>
    %12 = vector.broadcast %7 : vector<1x163xf32> to vector<200x163xf32>
    %13 = arith.mulf %11, %12 : vector<200x163xf32>
    %c0_6 = arith.constant 0 : index
    %c0_7 = arith.constant 0 : index
    %14 = vector.load %arg5[%c0_6, %c0_7] : memref<200x163xf32, #tpu.memory_space<vmem>>, vector<200x163xf32>
    tpu.vector_store %arg5[%c0_6, %c0_7], %13 {strides = array<i32>} : memref<200x163xf32, #tpu.memory_space<vmem>>, vector<200x163xf32>,
    return
  }
  func.func @transform_0(%arg0: i32, %arg1: i32) -> (i32, i32) {
    %c0_i32 = arith.constant 0 : i32
    return %arg1, %arg0 : i32, i32
  }
  func.func @transform_1(%arg0: i32, %arg1: i32) -> (i32, i32) {
    %c0_i32 = arith.constant 0 : i32
    %c0_i32_0 = arith.constant 0 : i32
    return %c0_i32, %arg0 : i32, i32
  }
  func.func @transform_2(%arg0: i32, %arg1: i32) -> (i32, i32) {
    %c0_i32 = arith.constant 0 : i32
    %c0_i32_0 = arith.constant 0 : i32
    return %c0_i32, %arg0 : i32, i32
  }
  func.func @transform_3(%arg0: i32, %arg1: i32) -> (i32, i32) {
    %c0_i32 = arith.constant 0 : i32
    return %arg1, %arg0 : i32, i32
  }
}

</mosaic_0001>

<llo_original>
// kernel: scaler_forward.1
$region0: #{scaler_forward.1}
  #allocation0 [shape = 'u32[]', space=smem, size = 0x4, offset = 0x4, fixed_abs, tag = 'smem constant byte address 0x4 - core index']
  #allocation1 [shape = 'u32[144,128]{1,0:T(1,128)}', space=vmem, size = 0x12000, scoped, tag = 'internal scratch']
  %s0 = inlined_call_operand.vmem [shape: f32[200,163], index: 0, kind: input, shape index: {}]
  %s1 = inlined_call_operand.vmem [shape: f32[1,163], index: 1, kind: input, shape index: {}]
  %s2 = inlined_call_operand.vmem [shape: f32[1,163], index: 2, kind: input, shape index: {}]
  %s3 = inlined_call_operand.vmem [shape: f32[200,163], index: 3, kind: output, shape index: {}]
  %s4 = sld [smem:[#allocation0]]
  $region22: #{scaler_forward.1} parent=0
    _
  %s6 = ssub.s32 1, %s4
  %s7 = scalar_select 0, %s6, %s4
  // Predicated region
  $region2: #{scaler_forward.1} parent=0 // pred_check
    _
  $region3: #{scaler_forward.1} parent=0 // pred_check_branch
    %9 = sbr.rel (0) target = $region5
  $region4: #{scaler_forward.1} parent=0 // pred_region
    _
  $region5: #{scaler_forward.1} parent=0 // pred_fallthru
    _
  // Predicated region
  $region6: #{scaler_forward.1} parent=0 // pred_check
    _
  $region7: #{scaler_forward.1} parent=0 // pred_check_branch
    %11 = sbr.rel (0) target = $region9
  $region8: #{scaler_forward.1} parent=0 // pred_region
    _
  $region9: #{scaler_forward.1} parent=0 // pred_fallthru
    _
  // Predicated region
  $region10: #{scaler_forward.1} parent=0 // pred_check
    _
  $region11: #{scaler_forward.1} parent=0 // pred_check_branch
    %13 = sbr.rel (0) target = $region13
  $region12: #{scaler_forward.1} parent=0 // pred_region
    _
  $region13: #{scaler_forward.1} parent=0 // pred_fallthru
    _
  %v14 = vld [vmem:[%s2] sm:$0x3]
  %v15 = vadd.f32 %v14, 1e-07
  %v16 = vrcp.pop %v15
  %v17 = vmul.f32 %v15, %v16
  %v18 = vsub.f32 2.0, %v17
  %v19 = vmul.f32 %v16, %v18
  %v20 = vld [vmem:[%s0] sm:$0xff]
  %v21 = vld [vmem:[%s0 + $0x8] sm:$0xff]
  %v22 = vld [vmem:[%s0 + $0x10] sm:$0xff]
  %v23 = vld [vmem:[%s0 + $0x18] sm:$0xff]
  %v24 = vld [vmem:[%s0 + $0x20] sm:$0xff]
  %v25 = vld [vmem:[%s0 + $0x28] sm:$0xff]
  %v26 = vld [vmem:[%s0 + $0x30] sm:$0xff]
  %v27 = vld [vmem:[%s0 + $0x38] sm:$0xff]
  %v28 = vld [vmem:[%s0 + $0x40] sm:$0xff]
  %v29 = vld [vmem:[%s0 + $0x48] sm:$0xff]
  %v30 = vld [vmem:[%s0 + $0x50] sm:$0xff]
  %v31 = vld [vmem:[%s0 + $0x58] sm:$0xff]
  %v32 = vld [vmem:[%s0 + $0x60] sm:$0xff]
  %v33 = vld [vmem:[%s0 + $0x68] sm:$0xff]
  %v34 = vld [vmem:[%s0 + $0x70] sm:$0xff]
  %v35 = vld [vmem:[%s0 + $0x78] sm:$0xff]
  %v36 = vld [vmem:[%s0 + $0x80] sm:$0xff]
  %v37 = vld [vmem:[%s0 + $0x88] sm:$0xff]
  %v38 = vld [vmem:[%s0 + $0x90] sm:$0xff]
  %v39 = vld [vmem:[%s0 + $0x98] sm:$0xff]
  %v40 = vld [vmem:[%s0 + $0xa0] sm:$0xff]
  %v41 = vld [vmem:[%s0 + $0xa8] sm:$0xff]
  %v42 = vld [vmem:[%s0 + $0xb0] sm:$0xff]
  %v43 = vld [vmem:[%s0 + $0xb8] sm:$0xff]
  %v44 = vld [vmem:[%s0 + $0xc0] sm:$0xff]
  %v45 = vld [vmem:[%s0 + $0xc8] sm:$0xff]
  %v46 = vld [vmem:[%s0 + $0xd0] sm:$0xff]
  %v47 = vld [vmem:[%s0 + $0xd8] sm:$0xff]
  %v48 = vld [vmem:[%s0 + $0xe0] sm:$0xff]
  %v49 = vld [vmem:[%s0 + $0xe8] sm:$0xff]
  %v50 = vld [vmem:[%s0 + $0xf0] sm:$0xff]
  %v51 = vld [vmem:[%s0 + $0xf8] sm:$0xff]
  %v52 = vld [vmem:[%s0 + $0x100] sm:$0xff]
  %v53 = vld [vmem:[%s0 + $0x108] sm:$0xff]
  %v54 = vld [vmem:[%s0 + $0x110] sm:$0xff]
  %v55 = vld [vmem:[%s0 + $0x118] sm:$0xff]
  %v56 = vld [vmem:[%s0 + $0x120] sm:$0xff]
  %v57 = vld [vmem:[%s0 + $0x128] sm:$0xff]
  %v58 = vld [vmem:[%s0 + $0x130] sm:$0xff]
  %v59 = vld [vmem:[%s0 + $0x138] sm:$0xff]
  %v60 = vld [vmem:[%s0 + $0x140] sm:$0xff]
  %v61 = vld [vmem:[%s0 + $0x148] sm:$0xff]
  %v62 = vld [vmem:[%s0 + $0x150] sm:$0xff]
  %v63 = vld [vmem:[%s0 + $0x158] sm:$0xff]
  %v64 = vld [vmem:[%s0 + $0x160] sm:$0xff]
  %v65 = vld [vmem:[%s0 + $0x168] sm:$0xff]
  %v66 = vld [vmem:[%s0 + $0x170] sm:$0xff]
  %v67 = vld [vmem:[%s0 + $0x178] sm:$0xff]
  %v68 = vld [vmem:[%s0 + $0x180] sm:$0xff]
  %v69 = vld [vmem:[%s0 + $0x188] sm:$0xff]
  %v70 = vld [vmem:[%s1] sm:$0x3]
  %v72 = vlaneseq
  %v73 = vshrl.u32 %v72, 7
  %v74 = vsub.s32 0, %v73
  %v75 = vrot.slane %v70, %v74
  %v76 = vlaneseq
  %v77 = vshrl.u32 %v76, 7
  %v78 = vsub.s32 1, %v77
  %v79 = vrot.slane %v70, %v78
  %v82 = vsub.f32 %v20, %v75
  %v83 = vsub.f32 %v21, %v79
  %v84 = vsub.f32 %v22, %v75
  %v85 = vsub.f32 %v23, %v79
  %v86 = vsub.f32 %v24, %v75
  %v87 = vsub.f32 %v25, %v79
  %v88 = vsub.f32 %v26, %v75
  %v89 = vsub.f32 %v27, %v79
  %v90 = vsub.f32 %v28, %v75
  %v91 = vsub.f32 %v29, %v79
  %v92 = vsub.f32 %v30, %v75
  %v93 = vsub.f32 %v31, %v79
  %v94 = vsub.f32 %v32, %v75
  %v95 = vsub.f32 %v33, %v79
  %v96 = vsub.f32 %v34, %v75
  %v97 = vsub.f32 %v35, %v79
  %v98 = vsub.f32 %v36, %v75
  %v99 = vsub.f32 %v37, %v79
  %v100 = vsub.f32 %v38, %v75
  %v101 = vsub.f32 %v39, %v79
  %v102 = vsub.f32 %v40, %v75
  %v103 = vsub.f32 %v41, %v79
  %v104 = vsub.f32 %v42, %v75
  %v105 = vsub.f32 %v43, %v79
  %v106 = vsub.f32 %v44, %v75
  %v107 = vsub.f32 %v45, %v79
  %v108 = vsub.f32 %v46, %v75
  %v109 = vsub.f32 %v47, %v79
  %v110 = vsub.f32 %v48, %v75
  %v111 = vsub.f32 %v49, %v79
  %v112 = vsub.f32 %v50, %v75
  %v113 = vsub.f32 %v51, %v79
  %v114 = vsub.f32 %v52, %v75
  %v115 = vsub.f32 %v53, %v79
  %v116 = vsub.f32 %v54, %v75
  %v117 = vsub.f32 %v55, %v79
  %v118 = vsub.f32 %v56, %v75
  %v119 = vsub.f32 %v57, %v79
  %v120 = vsub.f32 %v58, %v75
  %v121 = vsub.f32 %v59, %v79
  %v122 = vsub.f32 %v60, %v75
  %v123 = vsub.f32 %v61, %v79
  %v124 = vsub.f32 %v62, %v75
  %v125 = vsub.f32 %v63, %v79
  %v126 = vsub.f32 %v64, %v75
  %v127 = vsub.f32 %v65, %v79
  %v128 = vsub.f32 %v66, %v75
  %v129 = vsub.f32 %v67, %v79
  %v130 = vsub.f32 %v68, %v75
  %v131 = vsub.f32 %v69, %v79
  %v133 = vlaneseq
  %v134 = vshrl.u32 %v133, 7
  %v135 = vsub.s32 0, %v134
  %v136 = vrot.slane %v19, %v135
  %v137 = vlaneseq
  %v138 = vshrl.u32 %v137, 7
  %v139 = vsub.s32 1, %v138
  %v140 = vrot.slane %v19, %v139
  %v143 = vmul.f32 %v82, %v136
  %v144 = vmul.f32 %v83, %v140
  %v145 = vmul.f32 %v84, %v136
  %v146 = vmul.f32 %v85, %v140
  %v147 = vmul.f32 %v86, %v136
  %v148 = vmul.f32 %v87, %v140
  %v149 = vmul.f32 %v88, %v136
  %v150 = vmul.f32 %v89, %v140
  %v151 = vmul.f32 %v90, %v136
  %v152 = vmul.f32 %v91, %v140
  %v153 = vmul.f32 %v92, %v136
  %v154 = vmul.f32 %v93, %v140
  %v155 = vmul.f32 %v94, %v136
  %v156 = vmul.f32 %v95, %v140
  %v157 = vmul.f32 %v96, %v136
  %v158 = vmul.f32 %v97, %v140
  %v159 = vmul.f32 %v98, %v136
  %v160 = vmul.f32 %v99, %v140
  %v161 = vmul.f32 %v100, %v136
  %v162 = vmul.f32 %v101, %v140
  %v163 = vmul.f32 %v102, %v136
  %v164 = vmul.f32 %v103, %v140
  %v165 = vmul.f32 %v104, %v136
  %v166 = vmul.f32 %v105, %v140
  %v167 = vmul.f32 %v106, %v136
  %v168 = vmul.f32 %v107, %v140
  %v169 = vmul.f32 %v108, %v136
  %v170 = vmul.f32 %v109, %v140
  %v171 = vmul.f32 %v110, %v136
  %v172 = vmul.f32 %v111, %v140
  %v173 = vmul.f32 %v112, %v136
  %v174 = vmul.f32 %v113, %v140
  %v175 = vmul.f32 %v114, %v136
  %v176 = vmul.f32 %v115, %v140
  %v177 = vmul.f32 %v116, %v136
  %v178 = vmul.f32 %v117, %v140
  %v179 = vmul.f32 %v118, %v136
  %v180 = vmul.f32 %v119, %v140
  %v181 = vmul.f32 %v120, %v136
  %v182 = vmul.f32 %v121, %v140
  %v183 = vmul.f32 %v122, %v136
  %v184 = vmul.f32 %v123, %v140
  %v185 = vmul.f32 %v124, %v136
  %v186 = vmul.f32 %v125, %v140
  %v187 = vmul.f32 %v126, %v136
  %v188 = vmul.f32 %v127, %v140
  %v189 = vmul.f32 %v128, %v136
  %v190 = vmul.f32 %v129, %v140
  %v191 = vmul.f32 %v130, %v136
  %v192 = vmul.f32 %v131, %v140
  %193 = vst [vmem:[%s3] sm:$0xff] %v143
  %vm194 = vcmask 285696
  %195 = vst.msk [vmem:[%s3 + $0x8] sm:$0xff] %vm194, %v144
  %196 = vst [vmem:[%s3 + $0x10] sm:$0xff] %v145
  %197 = vst.msk [vmem:[%s3 + $0x18] sm:$0xff] %vm194, %v146
  %198 = vst [vmem:[%s3 + $0x20] sm:$0xff] %v147
  %199 = vst.msk [vmem:[%s3 + $0x28] sm:$0xff] %vm194, %v148
  %200 = vst [vmem:[%s3 + $0x30] sm:$0xff] %v149
  %201 = vst.msk [vmem:[%s3 + $0x38] sm:$0xff] %vm194, %v150
  %202 = vst [vmem:[%s3 + $0x40] sm:$0xff] %v151
  %203 = vst.msk [vmem:[%s3 + $0x48] sm:$0xff] %vm194, %v152
  %204 = vst [vmem:[%s3 + $0x50] sm:$0xff] %v153
  %205 = vst.msk [vmem:[%s3 + $0x58] sm:$0xff] %vm194, %v154
  %206 = vst [vmem:[%s3 + $0x60] sm:$0xff] %v155
  %207 = vst.msk [vmem:[%s3 + $0x68] sm:$0xff] %vm194, %v156
  %208 = vst [vmem:[%s3 + $0x70] sm:$0xff] %v157
  %209 = vst.msk [vmem:[%s3 + $0x78] sm:$0xff] %vm194, %v158
  %210 = vst [vmem:[%s3 + $0x80] sm:$0xff] %v159
  %211 = vst.msk [vmem:[%s3 + $0x88] sm:$0xff] %vm194, %v160
  %212 = vst [vmem:[%s3 + $0x90] sm:$0xff] %v161
  %213 = vst.msk [vmem:[%s3 + $0x98] sm:$0xff] %vm194, %v162
  %214 = vst [vmem:[%s3 + $0xa0] sm:$0xff] %v163
  %215 = vst.msk [vmem:[%s3 + $0xa8] sm:$0xff] %vm194, %v164
  %216 = vst [vmem:[%s3 + $0xb0] sm:$0xff] %v165
  %217 = vst.msk [vmem:[%s3 + $0xb8] sm:$0xff] %vm194, %v166
  %218 = vst [vmem:[%s3 + $0xc0] sm:$0xff] %v167
  %219 = vst.msk [vmem:[%s3 + $0xc8] sm:$0xff] %vm194, %v168
  %220 = vst [vmem:[%s3 + $0xd0] sm:$0xff] %v169
  %221 = vst.msk [vmem:[%s3 + $0xd8] sm:$0xff] %vm194, %v170
  %222 = vst [vmem:[%s3 + $0xe0] sm:$0xff] %v171
  %223 = vst.msk [vmem:[%s3 + $0xe8] sm:$0xff] %vm194, %v172
  %224 = vst [vmem:[%s3 + $0xf0] sm:$0xff] %v173
  %225 = vst.msk [vmem:[%s3 + $0xf8] sm:$0xff] %vm194, %v174
  %226 = vst [vmem:[%s3 + $0x100] sm:$0xff] %v175
  %227 = vst.msk [vmem:[%s3 + $0x108] sm:$0xff] %vm194, %v176
  %228 = vst [vmem:[%s3 + $0x110] sm:$0xff] %v177
  %229 = vst.msk [vmem:[%s3 + $0x118] sm:$0xff] %vm194, %v178
  %230 = vst [vmem:[%s3 + $0x120] sm:$0xff] %v179
  %231 = vst.msk [vmem:[%s3 + $0x128] sm:$0xff] %vm194, %v180
  %232 = vst [vmem:[%s3 + $0x130] sm:$0xff] %v181
  %233 = vst.msk [vmem:[%s3 + $0x138] sm:$0xff] %vm194, %v182
  %234 = vst [vmem:[%s3 + $0x140] sm:$0xff] %v183
  %235 = vst.msk [vmem:[%s3 + $0x148] sm:$0xff] %vm194, %v184
  %236 = vst [vmem:[%s3 + $0x150] sm:$0xff] %v185
  %237 = vst.msk [vmem:[%s3 + $0x158] sm:$0xff] %vm194, %v186
  %238 = vst [vmem:[%s3 + $0x160] sm:$0xff] %v187
  %239 = vst.msk [vmem:[%s3 + $0x168] sm:$0xff] %vm194, %v188
  %240 = vst [vmem:[%s3 + $0x170] sm:$0xff] %v189
  %241 = vst.msk [vmem:[%s3 + $0x178] sm:$0xff] %vm194, %v190
  %242 = vst [vmem:[%s3 + $0x180] sm:$0xff] %v191
  %243 = vst.msk [vmem:[%s3 + $0x188] sm:$0xff] %vm194, %v192
  // Predicated region
  $region14: #{scaler_forward.1} parent=0 // pred_check
    _
  $region15: #{scaler_forward.1} parent=0 // pred_check_branch
    %245 = sbr.rel (0) target = $region17
  $region16: #{scaler_forward.1} parent=0 // pred_region
    _
  $region17: #{scaler_forward.1} parent=0 // pred_fallthru
    _
  // Predicated region
  $region18: #{scaler_forward.1} parent=0 // pred_check
    _
  $region19: #{scaler_forward.1} parent=0 // pred_check_branch
    %247 = sbr.rel (0) target = $region21
  $region20: #{scaler_forward.1} parent=0 // pred_region
    _
  $region21: #{scaler_forward.1} parent=0 // pred_fallthru
    _

</llo_original>
